<compile_context>
chip_gen: v5e
topology: v5e:2x2
jax: 0.10.0
libtpu: 0.0.40
codegen_flags: <defaults>
</compile_context>

<pallas_src>
import jax
import jax.numpy as jnp
from jax import lax
from jax.experimental import pallas as pl
from jax.experimental.pallas import tpu as pltpu

INPUT_DIM = 1280
PROJ_DIM = 96
HIDDEN = 64
NUM_CLASSES = 2
LN_EPS = 1e-5
GATES = 4 * HIDDEN        # per-direction gate width (256)
GATES2 = 2 * GATES        # fwd + bwd gate width (512), lane-dense


# --------------------------------------------------------------------------- helpers
def _pick_chunk(T, target, multiple_of=1):
    """Largest divisor of T that is <= target and a multiple of `multiple_of`.
    Falls back to T (a block equal to the full dim is always legal)."""
    for c in range(min(target, T), 0, -1):
        if T % c == 0 and c % multiple_of == 0:
            return c
    return T


def _vmem_limit(bytes_needed):
    # explicit scoped-VMEM limit sized from the actual block bytes (+margin),
    # clamped below every generation's physical VMEM (v7x: 64 MiB).
    return int(min(max(2 * bytes_needed + (4 << 20), 16 << 20), 48 << 20))


# ------------------------------------------------------ kernel 1: projection + gates
def _proj_gates_kernel(x_ref, wp_ref, bp_ref, wih_ref, o_ref):
    # x_ref: (B, TT, D) batch-first input chunk; o_ref: (TT, B, 8H) time-major gates.
    B, TT, D = x_ref.shape
    x2 = x_ref[...].reshape(B * TT, D)
    xp = jnp.dot(x2, wp_ref[...], preferred_element_type=jnp.float32) + bp_ref[...]
    g = jnp.dot(xp, wih_ref[...], preferred_element_type=jnp.float32)  # (B*TT, 8H)
    # Produce the time-major layout here so it rides the output DMA instead of a
    # wrapper-side HBM transpose; B is small so static per-batch stores suffice.
    for b in range(B):
        o_ref[:, b, :] = g[b * TT:(b + 1) * TT, :]


def proj_gates(x, w_proj, b_proj, w_ih_cat, *, chunk_t=None):
    B, T, D = x.shape
    G = w_ih_cat.shape[1]
    if chunk_t is None:
        chunk_t = _pick_chunk(T, 128, multiple_of=8)
    assert T % chunk_t == 0 and (chunk_t % 8 == 0 or chunk_t == T), chunk_t
    nt = T // chunk_t
    block_bytes = 4 * (B * chunk_t * D + chunk_t * B * G
                       + D * PROJ_DIM + PROJ_DIM + PROJ_DIM * G)
    return pl.pallas_call(
        _proj_gates_kernel,
        out_shape=jax.ShapeDtypeStruct((T, B, G), jnp.float32),
        grid=(nt,),
        in_specs=[
            pl.BlockSpec((B, chunk_t, D), lambda c: (0, c, 0)),
            pl.BlockSpec((D, PROJ_DIM), lambda c: (0, 0)),
            pl.BlockSpec((1, PROJ_DIM), lambda c: (0, 0)),
            pl.BlockSpec((PROJ_DIM, G), lambda c: (0, 0)),
        ],
        out_specs=pl.BlockSpec((chunk_t, B, G), lambda c: (c, 0, 0)),
        compiler_params=pltpu.CompilerParams(
            dimension_semantics=("parallel",),
            vmem_limit_bytes=_vmem_limit(block_bytes)),
    )(x, w_proj, b_proj, w_ih_cat)


# ------------------------------------------------ kernel 2: recurrence + LN/FC head
def _gate_nonlin(gates, c_prev):
    # gate column order [i, f, o, g]: one contiguous sigmoid block + one tanh block.
    H = HIDDEN
    sig = jax.nn.sigmoid(gates[:, :3 * H])
    i = sig[:, 0:H]
    f = sig[:, H:2 * H]
    o = sig[:, 2 * H:3 * H]
    g = jnp.tanh(gates[:, 3 * H:])
    c_new = f * c_prev + i * g
    h_new = o * jnp.tanh(c_new)
    return h_new, c_new


def _lstm_head_kernel(xg_ref, whh_f_ref, b_f_ref, b_b_ref,
                      gamma_ref, beta_ref, wfc_ref, bfc_ref,
                      o_ref, h_ref, c_ref):
    c_idx = pl.program_id(0)
    TT, B, _ = xg_ref.shape

    @pl.when(c_idx == 0)
    def _init():
        h_ref[...] = jnp.zeros_like(h_ref)
        c_ref[...] = jnp.zeros_like(c_ref)

    # hoist loop-invariant weight/bias loads out of the recurrence
    whh = whh_f_ref[...]
    bias_f = b_f_ref[...]

    def step(t, carry):
        h, c = carry
        gates = (xg_ref[t, :, :GATES]
                 + jnp.dot(h, whh, preferred_element_type=jnp.float32)
                 + bias_f)
        return _gate_nonlin(gates, c)

    unroll = TT if TT <= 8 else 8
    h, c = lax.fori_loop(0, TT, step, (h_ref[...], c_ref[...]), unroll=unroll)
    h_ref[...] = h
    c_ref[...] = c

    @pl.when(c_idx == pl.num_programs(0) - 1)
    def _finalize():
        # Reverse direction: only output[:, -1, H:] is consumed, which is one cell
        # step on x[T-1] from the zero state (so h0 @ W_hh_reverse == 0 exactly).
        gates_b = xg_ref[TT - 1, :, GATES:] + b_b_ref[...]
        h_b, _ = _gate_nonlin(gates_b, jnp.zeros_like(h))
        last = jnp.concatenate([h, h_b], axis=-1)                # (B, 2H)
        mean = jnp.mean(last, axis=-1, keepdims=True)
        var = jnp.mean(jnp.square(last - mean), axis=-1, keepdims=True)
        xn = (last - mean) * lax.rsqrt(var + LN_EPS)
        xn = xn * gamma_ref[...] + beta_ref[...]
        # nn.Dropout is identity at inference.
        o_ref[...] = (jnp.dot(xn, wfc_ref[...], preferred_element_type=jnp.float32)
                      + bfc_ref[...])


def lstm_head(xgates, whh_f, b_f, b_b, gamma, beta, w_fc, b_fc, *, chunk_t=None):
    T, B, G = xgates.shape
    H = HIDDEN
    if chunk_t is None:
        chunk_t = _pick_chunk(T, 128)
    assert T % chunk_t == 0, chunk_t
    nt = T // chunk_t
    block_bytes = 4 * (chunk_t * B * G + H * GATES + 2 * GATES + 4 * H
                       + 2 * H * NUM_CLASSES + NUM_CLASSES + 2 * B * H)
    return pl.pallas_call(
        _lstm_head_kernel,
        out_shape=jax.ShapeDtypeStruct((B, NUM_CLASSES), jnp.float32),
        grid=(nt,),
        in_specs=[
            pl.BlockSpec((chunk_t, B, G), lambda c: (c, 0, 0)),
            pl.BlockSpec((H, GATES), lambda c: (0, 0)),
            pl.BlockSpec((1, GATES), lambda c: (0, 0)),
            pl.BlockSpec((1, GATES), lambda c: (0, 0)),
            pl.BlockSpec((1, 2 * H), lambda c: (0, 0)),
            pl.BlockSpec((1, 2 * H), lambda c: (0, 0)),
            pl.BlockSpec((2 * H, NUM_CLASSES), lambda c: (0, 0)),
            pl.BlockSpec((1, NUM_CLASSES), lambda c: (0, 0)),
        ],
        out_specs=pl.BlockSpec((B, NUM_CLASSES), lambda c: (0, 0)),
        scratch_shapes=[pltpu.VMEM((B, H), jnp.float32),
                        pltpu.VMEM((B, H), jnp.float32)],
        compiler_params=pltpu.CompilerParams(
            dimension_semantics=("arbitrary",),
            vmem_limit_bytes=_vmem_limit(block_bytes)),
    )(xgates, whh_f, b_f, b_b, gamma, beta, w_fc, b_fc)


# ---------------------------------------------------------------------- parameters
def init_params(key):
    """Random params in PyTorch layout (nn.Linear / nn.LSTM default init)."""
    ks = jax.random.split(key, 12)
    H, H4 = HIDDEN, 4 * HIDDEN

    def unif(k, shape, fan_in):
        bound = 1.0 / jnp.sqrt(jnp.float32(fan_in))
        return jax.random.uniform(k, shape, jnp.float32, -bound, bound)

    return {
        "proj.weight": unif(ks[0], (PROJ_DIM, INPUT_DIM), INPUT_DIM),
        "proj.bias": unif(ks[1], (PROJ_DIM,), INPUT_DIM),
        "lstm.weight_ih_l0": unif(ks[2], (H4, PROJ_DIM), H),
        "lstm.weight_hh_l0": unif(ks[3], (H4, H), H),
        "lstm.bias_ih_l0": unif(ks[4], (H4,), H),
        "lstm.bias_hh_l0": unif(ks[5], (H4,), H),
        "lstm.weight_ih_l0_reverse": unif(ks[6], (H4, PROJ_DIM), H),
        "lstm.weight_hh_l0_reverse": unif(ks[7], (H4, H), H),
        "lstm.bias_ih_l0_reverse": unif(ks[8], (H4,), H),
        "lstm.bias_hh_l0_reverse": unif(ks[9], (H4,), H),
        "norm.weight": jnp.ones((2 * H,), jnp.float32),
        "norm.bias": jnp.zeros((2 * H,), jnp.float32),
        "fc.weight": unif(ks[10], (NUM_CLASSES, 2 * H), 2 * H),
        "fc.bias": unif(ks[11], (NUM_CLASSES,), 2 * H),
    }


def _permute_gate_columns(w):
    """PyTorch gate order (i, f, g, o) -> kernel order (i, f, o, g) along last axis."""
    H = HIDDEN
    i, f, g, o = w[..., 0:H], w[..., H:2 * H], w[..., 2 * H:3 * H], w[..., 3 * H:]
    return jnp.concatenate([i, f, o, g], axis=-1)


def prepare_params(pt):
    """PyTorch-layout params -> kernel layout (pre-transposed, gate-permuted,
    fwd/bwd input->gate weights concatenated, per-direction biases fused)."""
    wih_f = _permute_gate_columns(pt["lstm.weight_ih_l0"].T)            # (96, 4H)
    wih_b = _permute_gate_columns(pt["lstm.weight_ih_l0_reverse"].T)    # (96, 4H)
    return {
        "w_proj": pt["proj.weight"].T,                                   # (1280, 96)
        "b_proj": pt["proj.bias"][None, :],                              # (1, 96)
        "w_ih_cat": jnp.concatenate([wih_f, wih_b], axis=1),             # (96, 8H)
        "whh_f": _permute_gate_columns(pt["lstm.weight_hh_l0"].T),       # (64, 4H)
        "b_f": _permute_gate_columns(
            (pt["lstm.bias_ih_l0"] + pt["lstm.bias_hh_l0"])[None, :]),   # (1, 4H)
        # weight_hh_l0_reverse is mathematically unused: only output[:, -1, :]
        # is consumed, and the reverse direction's value there is one step from
        # the zero hidden state.
        "b_b": _permute_gate_columns(
            (pt["lstm.bias_ih_l0_reverse"] + pt["lstm.bias_hh_l0_reverse"])[None, :]),
        "gamma": pt["norm.weight"][None, :],                             # (1, 2H)
        "beta": pt["norm.bias"][None, :],                                # (1, 2H)
        "w_fc": pt["fc.weight"].T,                                       # (2H, C)
        "b_fc": pt["fc.bias"][None, :],                                  # (1, C)
    }


# -------------------------------------------------------------------------- forward
def balanced_lstm_forward(x, params, *, proj_chunk_t=None, lstm_chunk_t=None):
    # TODO(synk): pack_padded_sequence / pad_packed_sequence (lengths != None) path
    # is not implemented; this is the lengths=None forward in eval mode (dropout=id).
    if x.ndim == 2:
        x = x[:, None, :]
    xgates = proj_gates(x, params["w_proj"], params["b_proj"], params["w_ih_cat"],
                        chunk_t=proj_chunk_t)
    return lstm_head(xgates, params["whh_f"], params["b_f"], params["b_b"],
                     params["gamma"], params["beta"], params["w_fc"], params["b_fc"],
                     chunk_t=lstm_chunk_t)


if __name__ == "__main__":
    key = jax.random.PRNGKey(0)
    pkey, xkey = jax.random.split(key)
    params = prepare_params(init_params(pkey))

    B, T = 2, 8
    x = jax.random.normal(xkey, (B, T, INPUT_DIM), jnp.float32)

    # lstm_chunk_t=4 exercises the chunked-recurrence carry path (2 grid steps).
    out = balanced_lstm_forward(x, params, lstm_chunk_t=4)
    out = jax.block_until_ready(out)
    assert out.shape == (B, NUM_CLASSES)
    print("KERNEL_OK")
</pallas_src>

<mosaic_0001>
module attributes {stable_mosaic.version = 11 : i64} {
  func.func @_proj_gates_kernel(%arg0: i32, %arg1: memref<2x8x1280xf32, #tpu.memory_space<vmem>>, %arg2: memref<1280x96xf32, #tpu.memory_space<vmem>>, %arg3: memref<1x96xf32, #tpu.memory_space<vmem>>, %arg4: memref<96x512xf32, #tpu.memory_space<vmem>>, %arg5: memref<8x2x512xf32, #tpu.memory_space<vmem>>) attributes {dimension_semantics = [#tpu.dimension_semantics<parallel>], iteration_bounds = array<i64: 1>, scalar_prefetch = 0 : i64, scratch_operands = 0 : i64, tpu.core_type = #tpu.core_type<tc>, window_params = [{transform_indices = @transform_0, window_bounds = array<i64: 2, 8, 1280>}, {pipeline_mode = #tpu.pipeline_mode<synchronous>, transform_indices = @transform_1, window_bounds = array<i64: 1280, 96>}, {pipeline_mode = #tpu.pipeline_mode<synchronous>, transform_indices = @transform_2, window_bounds = array<i64: 1, 96>}, {pipeline_mode = #tpu.pipeline_mode<synchronous>, transform_indices = @transform_3, window_bounds = array<i64: 96, 512>}, {transform_indices = @transform_4, window_bounds = array<i64: 8, 2, 512>}]} {
    %c0 = arith.constant 0 : index
    %c0_0 = arith.constant 0 : index
    %c0_1 = arith.constant 0 : index
    %0 = vector.load %arg1[%c0, %c0_0, %c0_1] : memref<2x8x1280xf32, #tpu.memory_space<vmem>>, vector<2x8x1280xf32>
    %1 = vector.shape_cast %0 : vector<2x8x1280xf32> to vector<16x1280xf32>
    %c0_2 = arith.constant 0 : index
    %c0_3 = arith.constant 0 : index
    %2 = vector.load %arg2[%c0_2, %c0_3] : memref<1280x96xf32, #tpu.memory_space<vmem>>, vector<1280x96xf32>
    %cst = arith.constant dense<0.000000e+00> : vector<16x96xf32>
    %3 = tpu.matmul %1, %2, %cst {dimension_numbers = #tpu.dot_dimension_numbers<[1], [0], [0], [1], [0, 0, 1, 1], [], []>} : vector<16x1280xf32>, vector<1280x96xf32>, vector<16x96xf32> -> vector<16x96xf32>
    %c0_4 = arith.constant 0 : index
    %c0_5 = arith.constant 0 : index
    %4 = vector.load %arg3[%c0_4, %c0_5] : memref<1x96xf32, #tpu.memory_space<vmem>>, vector<1x96xf32>
    %5 = vector.broadcast %4 : vector<1x96xf32> to vector<16x96xf32>
    %6 = arith.addf %3, %5 : vector<16x96xf32>
    %c0_6 = arith.constant 0 : index
    %c0_7 = arith.constant 0 : index
    %7 = vector.load %arg4[%c0_6, %c0_7] : memref<96x512xf32, #tpu.memory_space<vmem>>, vector<96x512xf32>
    %cst_8 = arith.constant dense<0.000000e+00> : vector<16x512xf32>
    %8 = tpu.matmul %6, %7, %cst_8 {dimension_numbers = #tpu.dot_dimension_numbers<[1], [0], [0], [1], [0, 0, 1, 1], [], []>} : vector<16x96xf32>, vector<96x512xf32>, vector<16x512xf32> -> vector<16x512xf32>
    %9 = vector.extract_strided_slice %8 {offsets = [0, 0], sizes = [8, 512], strides = [1, 1]} : vector<16x512xf32> to vector<8x512xf32>
    %c0_9 = arith.constant 0 : index
    %c0_10 = arith.constant 0 : index
    %c0_11 = arith.constant 0 : index
    %10 = vector.load %arg5[%c0_9, %c0_10, %c0_11] : memref<8x2x512xf32, #tpu.memory_space<vmem>>, vector<8x1x512xf32>
    %11 = vector.shape_cast %10 : vector<8x1x512xf32> to vector<8x512xf32>
    %12 = vector.shape_cast %9 : vector<8x512xf32> to vector<8x1x512xf32>
    tpu.vector_store %arg5[%c0_9, %c0_10, %c0_11], %12 {strides = array<i32>} : memref<8x2x512xf32, #tpu.memory_space<vmem>>, vector<8x1x512xf32>,
    %13 = vector.extract_strided_slice %8 {offsets = [8, 0], sizes = [8, 512], strides = [1, 1]} : vector<16x512xf32> to vector<8x512xf32>
    %c0_12 = arith.constant 0 : index
    %c1 = arith.constant 1 : index
    %c0_13 = arith.constant 0 : index
    %14 = vector.load %arg5[%c0_12, %c1, %c0_13] : memref<8x2x512xf32, #tpu.memory_space<vmem>>, vector<8x1x512xf32>
    %15 = vector.shape_cast %14 : vector<8x1x512xf32> to vector<8x512xf32>
    %16 = vector.shape_cast %13 : vector<8x512xf32> to vector<8x1x512xf32>
    tpu.vector_store %arg5[%c0_12, %c1, %c0_13], %16 {strides = array<i32>} : memref<8x2x512xf32, #tpu.memory_space<vmem>>, vector<8x1x512xf32>,
    return
  }
  func.func @transform_0(%arg0: i32) -> (i32, i32, i32) {
    %c0_i32 = arith.constant 0 : i32
    %c0_i32_0 = arith.constant 0 : i32
    %c0_i32_1 = arith.constant 0 : i32
    return %c0_i32, %arg0, %c0_i32_0 : i32, i32, i32
  }
  func.func @transform_1(%arg0: i32) -> (i32, i32) {
    %c0_i32 = arith.constant 0 : i32
    %c0_i32_0 = arith.constant 0 : i32
    %c0_i32_1 = arith.constant 0 : i32
    return %c0_i32, %c0_i32_0 : i32, i32
  }
  func.func @transform_2(%arg0: i32) -> (i32, i32) {
    %c0_i32 = arith.constant 0 : i32
    %c0_i32_0 = arith.constant 0 : i32
    %c0_i32_1 = arith.constant 0 : i32
    return %c0_i32, %c0_i32_0 : i32, i32
  }
  func.func @transform_3(%arg0: i32) -> (i32, i32) {
    %c0_i32 = arith.constant 0 : i32
    %c0_i32_0 = arith.constant 0 : i32
    %c0_i32_1 = arith.constant 0 : i32
    return %c0_i32, %c0_i32_0 : i32, i32
  }
  func.func @transform_4(%arg0: i32) -> (i32, i32, i32) {
    %c0_i32 = arith.constant 0 : i32
    %c0_i32_0 = arith.constant 0 : i32
    %c0_i32_1 = arith.constant 0 : i32
    return %arg0, %c0_i32, %c0_i32_0 : i32, i32, i32
  }
}

</mosaic_0001>

<llo_original>
// kernel: tpu_custom_call.1
$region0: #{tpu_custom_call.1}
  #allocation0 [shape = 'u32[]', space=smem, size = 0x4, offset = 0x4, fixed_abs, tag = 'smem constant byte address 0x4 - core index']
  #allocation1 [shape = 'u32[72,128]{1,0:T(1,128)}', space=vmem, size = 0x9000, scoped, tag = 'internal scratch']
  %s0 = inlined_call_operand.vmem [shape: f32[2,8,1280], index: 0, kind: input, shape index: {}]
  %s1 = inlined_call_operand.vmem [shape: f32[1280,96], index: 1, kind: input, shape index: {}]
  %s2 = inlined_call_operand.vmem [shape: f32[1,96], index: 2, kind: input, shape index: {}]
  %s3 = inlined_call_operand.vmem [shape: f32[96,512], index: 3, kind: input, shape index: {}]
  %s4 = inlined_call_operand.hbm [shape: f32[8,2,512], index: 4, kind: output, shape index: {}]
  %s5 = sld [smem:[#allocation0]]
  $region26: #{tpu_custom_call.1} parent=0
    _
  %s7 = ssub.s32 1, %s5
  %s8 = scalar_select 0, %s7, %s5
  $region1: #{tpu_custom_call.1} parent=0
    #allocation2 [shape = 'u8[32768]{0}', space=vmem, size = 0x8000, scoped, tag = 'output window, operand 0, single buffered']
    #allocation3 [shape = 's32[1]{0}', space=sflag, size = 0x4, scoped, tag = 'scoped memory for tpu_custom_call.1']
    %9 = vsyncpa [#allocation3], 0
    // Predicated region
    $region2: #{tpu_custom_call.1} parent=1 // pred_check
      _
    $region3: #{tpu_custom_call.1} parent=1 // pred_check_branch
      %11 = sbr.rel (0) target = $region5
    $region4: #{tpu_custom_call.1} parent=1 // pred_region
      _
    $region5: #{tpu_custom_call.1} parent=1 // pred_fallthru
      _
    // Predicated region
    $region6: #{tpu_custom_call.1} parent=1 // pred_check
      _
    $region7: #{tpu_custom_call.1} parent=1 // pred_check_branch
      %13 = sbr.rel (0) target = $region9
    $region8: #{tpu_custom_call.1} parent=1 // pred_region
      _
    $region9: #{tpu_custom_call.1} parent=1 // pred_fallthru
      _
    // Predicated region
    $region10: #{tpu_custom_call.1} parent=1 // pred_check
      _
    $region11: #{tpu_custom_call.1} parent=1 // pred_check_branch
      %15 = sbr.rel (0) target = $region13
    $region12: #{tpu_custom_call.1} parent=1 // pred_region
      _
    $region13: #{tpu_custom_call.1} parent=1 // pred_fallthru
      _
    // Predicated region
    $region14: #{tpu_custom_call.1} parent=1 // pred_check
      _
    $region15: #{tpu_custom_call.1} parent=1 // pred_check_branch
      %17 = sbr.rel (0) target = $region17
    $region16: #{tpu_custom_call.1} parent=1 // pred_region
      _
    $region17: #{tpu_custom_call.1} parent=1 // pred_fallthru
      _
    %v18 = vld [vmem:[%s0] sm:$0xff]
    %v19 = vld [vmem:[%s0 + $0x8] sm:$0xff]
    %v20 = vld [vmem:[%s0 + $0x10] sm:$0xff]
    %v21 = vld [vmem:[%s0 + $0x18] sm:$0xff]
    %v22 = vld [vmem:[%s0 + $0x20] sm:$0xff]
    %v23 = vld [vmem:[%s0 + $0x28] sm:$0xff]
    %v24 = vld [vmem:[%s0 + $0x30] sm:$0xff]
    %v25 = vld [vmem:[%s0 + $0x38] sm:$0xff]
    %v26 = vld [vmem:[%s0 + $0x40] sm:$0xff]
    %v27 = vld [vmem:[%s0 + $0x48] sm:$0xff]
    %v28 = vld [vmem:[%s0 + $0x50] sm:$0xff]
    %v29 = vld [vmem:[%s0 + $0x58] sm:$0xff]
    %v30 = vld [vmem:[%s0 + $0x60] sm:$0xff]
    %v31 = vld [vmem:[%s0 + $0x68] sm:$0xff]
    %v32 = vld [vmem:[%s0 + $0x70] sm:$0xff]
    %v33 = vld [vmem:[%s0 + $0x78] sm:$0xff]
    %v34 = vld [vmem:[%s0 + $0x80] sm:$0xff]
    %v35 = vld [vmem:[%s0 + $0x88] sm:$0xff]
    %v36 = vld [vmem:[%s0 + $0x90] sm:$0xff]
    %v37 = vld [vmem:[%s0 + $0x98] sm:$0xff]
    %v38 = vld [vmem:[%s1] sm:$0xff]
    %v39 = vld [vmem:[%s1 + $0x8] sm:$0xff]
    %v40 = vld [vmem:[%s1 + $0x10] sm:$0xff]
    %v41 = vld [vmem:[%s1 + $0x18] sm:$0xff]
    %v42 = vld [vmem:[%s1 + $0x20] sm:$0xff]
    %v43 = vld [vmem:[%s1 + $0x28] sm:$0xff]
    %v44 = vld [vmem:[%s1 + $0x30] sm:$0xff]
    %v45 = vld [vmem:[%s1 + $0x38] sm:$0xff]
    %v46 = vld [vmem:[%s1 + $0x40] sm:$0xff]
    %v47 = vld [vmem:[%s1 + $0x48] sm:$0xff]
    %v48 = vld [vmem:[%s1 + $0x50] sm:$0xff]
    %v49 = vld [vmem:[%s1 + $0x58] sm:$0xff]
    %v50 = vld [vmem:[%s1 + $0x60] sm:$0xff]
    %v51 = vld [vmem:[%s1 + $0x68] sm:$0xff]
    %v52 = vld [vmem:[%s1 + $0x70] sm:$0xff]
    %v53 = vld [vmem:[%s1 + $0x78] sm:$0xff]
    %v54 = vld [vmem:[%s1 + $0x80] sm:$0xff]
    %v55 = vld [vmem:[%s1 + $0x88] sm:$0xff]
    %v56 = vld [vmem:[%s1 + $0x90] sm:$0xff]
    %v57 = vld [vmem:[%s1 + $0x98] sm:$0xff]
    %v58 = vld [vmem:[%s1 + $0xa0] sm:$0xff]
    %v59 = vld [vmem:[%s1 + $0xa8] sm:$0xff]
    %v60 = vld [vmem:[%s1 + $0xb0] sm:$0xff]
    %v61 = vld [vmem:[%s1 + $0xb8] sm:$0xff]
    %v62 = vld [vmem:[%s1 + $0xc0] sm:$0xff]
    %v63 = vld [vmem:[%s1 + $0xc8] sm:$0xff]
    %v64 = vld [vmem:[%s1 + $0xd0] sm:$0xff]
    %v65 = vld [vmem:[%s1 + $0xd8] sm:$0xff]
    %v66 = vld [vmem:[%s1 + $0xe0] sm:$0xff]
    %v67 = vld [vmem:[%s1 + $0xe8] sm:$0xff]
    %v68 = vld [vmem:[%s1 + $0xf0] sm:$0xff]
    %v69 = vld [vmem:[%s1 + $0xf8] sm:$0xff]
    %v70 = vld [vmem:[%s1 + $0x100] sm:$0xff]
    %v71 = vld [vmem:[%s1 + $0x108] sm:$0xff]
    %v72 = vld [vmem:[%s1 + $0x110] sm:$0xff]
    %v73 = vld [vmem:[%s1 + $0x118] sm:$0xff]
    %v74 = vld [vmem:[%s1 + $0x120] sm:$0xff]
    %v75 = vld [vmem:[%s1 + $0x128] sm:$0xff]
    %v76 = vld [vmem:[%s1 + $0x130] sm:$0xff]
    %v77 = vld [vmem:[%s1 + $0x138] sm:$0xff]
    %v78 = vld [vmem:[%s1 + $0x140] sm:$0xff]
    %v79 = vld [vmem:[%s1 + $0x148] sm:$0xff]
    %v80 = vld [vmem:[%s1 + $0x150] sm:$0xff]
    %v81 = vld [vmem:[%s1 + $0x158] sm:$0xff]
    %v82 = vld [vmem:[%s1 + $0x160] sm:$0xff]
    %v83 = vld [vmem:[%s1 + $0x168] sm:$0xff]
    %v84 = vld [vmem:[%s1 + $0x170] sm:$0xff]
    %v85 = vld [vmem:[%s1 + $0x178] sm:$0xff]
    %v86 = vld [vmem:[%s1 + $0x180] sm:$0xff]
    %v87 = vld [vmem:[%s1 + $0x188] sm:$0xff]
    %v88 = vld [vmem:[%s1 + $0x190] sm:$0xff]
    %v89 = vld [vmem:[%s1 + $0x198] sm:$0xff]
    %v90 = vld [vmem:[%s1 + $0x1a0] sm:$0xff]
    %v91 = vld [vmem:[%s1 + $0x1a8] sm:$0xff]
    %v92 = vld [vmem:[%s1 + $0x1b0] sm:$0xff]
    %v93 = vld [vmem:[%s1 + $0x1b8] sm:$0xff]
    %v94 = vld [vmem:[%s1 + $0x1c0] sm:$0xff]
    %v95 = vld [vmem:[%s1 + $0x1c8] sm:$0xff]
    %v96 = vld [vmem:[%s1 + $0x1d0] sm:$0xff]
    %v97 = vld [vmem:[%s1 + $0x1d8] sm:$0xff]
    %v98 = vld [vmem:[%s1 + $0x1e0] sm:$0xff]
    %v99 = vld [vmem:[%s1 + $0x1e8] sm:$0xff]
    %v100 = vld [vmem:[%s1 + $0x1f0] sm:$0xff]
    %v101 = vld [vmem:[%s1 + $0x1f8] sm:$0xff]
    %v102 = vld [vmem:[%s1 + $0x200] sm:$0xff]
    %v103 = vld [vmem:[%s1 + $0x208] sm:$0xff]
    %v104 = vld [vmem:[%s1 + $0x210] sm:$0xff]
    %v105 = vld [vmem:[%s1 + $0x218] sm:$0xff]
    %v106 = vld [vmem:[%s1 + $0x220] sm:$0xff]
    %v107 = vld [vmem:[%s1 + $0x228] sm:$0xff]
    %v108 = vld [vmem:[%s1 + $0x230] sm:$0xff]
    %v109 = vld [vmem:[%s1 + $0x238] sm:$0xff]
    %v110 = vld [vmem:[%s1 + $0x240] sm:$0xff]
    %v111 = vld [vmem:[%s1 + $0x248] sm:$0xff]
    %v112 = vld [vmem:[%s1 + $0x250] sm:$0xff]
    %v113 = vld [vmem:[%s1 + $0x258] sm:$0xff]
    %v114 = vld [vmem:[%s1 + $0x260] sm:$0xff]
    %v115 = vld [vmem:[%s1 + $0x268] sm:$0xff]
    %v116 = vld [vmem:[%s1 + $0x270] sm:$0xff]
    %v117 = vld [vmem:[%s1 + $0x278] sm:$0xff]
    %v118 = vld [vmem:[%s1 + $0x280] sm:$0xff]
    %v119 = vld [vmem:[%s1 + $0x288] sm:$0xff]
    %v120 = vld [vmem:[%s1 + $0x290] sm:$0xff]
    %v121 = vld [vmem:[%s1 + $0x298] sm:$0xff]
    %v122 = vld [vmem:[%s1 + $0x2a0] sm:$0xff]
    %v123 = vld [vmem:[%s1 + $0x2a8] sm:$0xff]
    %v124 = vld [vmem:[%s1 + $0x2b0] sm:$0xff]
    %v125 = vld [vmem:[%s1 + $0x2b8] sm:$0xff]
    %v126 = vld [vmem:[%s1 + $0x2c0] sm:$0xff]
    %v127 = vld [vmem:[%s1 + $0x2c8] sm:$0xff]
    %v128 = vld [vmem:[%s1 + $0x2d0] sm:$0xff]
    %v129 = vld [vmem:[%s1 + $0x2d8] sm:$0xff]
    %v130 = vld [vmem:[%s1 + $0x2e0] sm:$0xff]
    %v131 = vld [vmem:[%s1 + $0x2e8] sm:$0xff]
    %v132 = vld [vmem:[%s1 + $0x2f0] sm:$0xff]
    %v133 = vld [vmem:[%s1 + $0x2f8] sm:$0xff]
    %v134 = vld [vmem:[%s1 + $0x300] sm:$0xff]
    %v135 = vld [vmem:[%s1 + $0x308] sm:$0xff]
    %v136 = vld [vmem:[%s1 + $0x310] sm:$0xff]
    %v137 = vld [vmem:[%s1 + $0x318] sm:$0xff]
    %v138 = vld [vmem:[%s1 + $0x320] sm:$0xff]
    %v139 = vld [vmem:[%s1 + $0x328] sm:$0xff]
    %v140 = vld [vmem:[%s1 + $0x330] sm:$0xff]
    %v141 = vld [vmem:[%s1 + $0x338] sm:$0xff]
    %v142 = vld [vmem:[%s1 + $0x340] sm:$0xff]
    %v143 = vld [vmem:[%s1 + $0x348] sm:$0xff]
    %v144 = vld [vmem:[%s1 + $0x350] sm:$0xff]
    %v145 = vld [vmem:[%s1 + $0x358] sm:$0xff]
    %v146 = vld [vmem:[%s1 + $0x360] sm:$0xff]
    %v147 = vld [vmem:[%s1 + $0x368] sm:$0xff]
    %v148 = vld [vmem:[%s1 + $0x370] sm:$0xff]
    %v149 = vld [vmem:[%s1 + $0x378] sm:$0xff]
    %v150 = vld [vmem:[%s1 + $0x380] sm:$0xff]
    %v151 = vld [vmem:[%s1 + $0x388] sm:$0xff]
    %v152 = vld [vmem:[%s1 + $0x390] sm:$0xff]
    %v153 = vld [vmem:[%s1 + $0x398] sm:$0xff]
    %v154 = vld [vmem:[%s1 + $0x3a0] sm:$0xff]
    %v155 = vld [vmem:[%s1 + $0x3a8] sm:$0xff]
    %v156 = vld [vmem:[%s1 + $0x3b0] sm:$0xff]
    %v157 = vld [vmem:[%s1 + $0x3b8] sm:$0xff]
    %v158 = vld [vmem:[%s1 + $0x3c0] sm:$0xff]
    %v159 = vld [vmem:[%s1 + $0x3c8] sm:$0xff]
    %v160 = vld [vmem:[%s1 + $0x3d0] sm:$0xff]
    %v161 = vld [vmem:[%s1 + $0x3d8] sm:$0xff]
    %v162 = vld [vmem:[%s1 + $0x3e0] sm:$0xff]
    %v163 = vld [vmem:[%s1 + $0x3e8] sm:$0xff]
    %v164 = vld [vmem:[%s1 + $0x3f0] sm:$0xff]
    %v165 = vld [vmem:[%s1 + $0x3f8] sm:$0xff]
    %v166 = vld [vmem:[%s1 + $0x400] sm:$0xff]
    %v167 = vld [vmem:[%s1 + $0x408] sm:$0xff]
    %v168 = vld [vmem:[%s1 + $0x410] sm:$0xff]
    %v169 = vld [vmem:[%s1 + $0x418] sm:$0xff]
    %v170 = vld [vmem:[%s1 + $0x420] sm:$0xff]
    %v171 = vld [vmem:[%s1 + $0x428] sm:$0xff]
    %v172 = vld [vmem:[%s1 + $0x430] sm:$0xff]
    %v173 = vld [vmem:[%s1 + $0x438] sm:$0xff]
    %v174 = vld [vmem:[%s1 + $0x440] sm:$0xff]
    %v175 = vld [vmem:[%s1 + $0x448] sm:$0xff]
    %v176 = vld [vmem:[%s1 + $0x450] sm:$0xff]
    %v177 = vld [vmem:[%s1 + $0x458] sm:$0xff]
    %v178 = vld [vmem:[%s1 + $0x460] sm:$0xff]
    %v179 = vld [vmem:[%s1 + $0x468] sm:$0xff]
    %v180 = vld [vmem:[%s1 + $0x470] sm:$0xff]
    %v181 = vld [vmem:[%s1 + $0x478] sm:$0xff]
    %v182 = vld [vmem:[%s1 + $0x480] sm:$0xff]
    %v183 = vld [vmem:[%s1 + $0x488] sm:$0xff]
    %v184 = vld [vmem:[%s1 + $0x490] sm:$0xff]
    %v185 = vld [vmem:[%s1 + $0x498] sm:$0xff]
    %v186 = vld [vmem:[%s1 + $0x4a0] sm:$0xff]
    %v187 = vld [vmem:[%s1 + $0x4a8] sm:$0xff]
    %v188 = vld [vmem:[%s1 + $0x4b0] sm:$0xff]
    %v189 = vld [vmem:[%s1 + $0x4b8] sm:$0xff]
    %v190 = vld [vmem:[%s1 + $0x4c0] sm:$0xff]
    %v191 = vld [vmem:[%s1 + $0x4c8] sm:$0xff]
    %v192 = vld [vmem:[%s1 + $0x4d0] sm:$0xff]
    %v193 = vld [vmem:[%s1 + $0x4d8] sm:$0xff]
    %v194 = vld [vmem:[%s1 + $0x4e0] sm:$0xff]
    %v195 = vld [vmem:[%s1 + $0x4e8] sm:$0xff]
    %v196 = vld [vmem:[%s1 + $0x4f0] sm:$0xff]
    %v197 = vld [vmem:[%s1 + $0x4f8] sm:$0xff]
    %v198 = vld [vmem:[%s2] sm:$0x1]
    %v200 = vperm.slane %v198, 0
    %202 = vmatpush.msra.mxu0 %v53
    %203 = vmatpush.msra.mxu0 %v52
    %204 = vmatpush.msra.mxu0 %v51
    %205 = vmatpush.msra.mxu0 %v50
    %206 = vmatpush.msra.mxu0 %v49
    %207 = vmatpush.msra.mxu0 %v48
    %208 = vmatpush.msra.mxu0 %v47
    %209 = vmatpush.msra.mxu0 %v46
    %210 = vmatpush.msra.mxu0 %v45
    %211 = vmatpush.msra.mxu0 %v44
    %212 = vmatpush.msra.mxu0 %v43
    %213 = vmatpush.msra.mxu0 %v42
    %214 = vmatpush.msra.mxu0 %v41
    %215 = vmatpush.msra.mxu0 %v40
    %216 = vmatpush.msra.mxu0 %v39
    %217 = vmatpush.msra.mxu0 %v38
    %218 = vmatmul.f32.gmra.mxu0 %v18
    %v219 = vpop.f32.mrf.mxu0
    %v220 = vadd.f32 %v200, %v219
    %221 = vmatmul.f32.gmra.mxu0 %v28
    %v222 = vpop.f32.mrf.mxu0
    %v223 = vadd.f32 %v200, %v222
    %224 = vdwg.mxu0
    %225 = vmatpush.msra.mxu0 %v69
    %226 = vmatpush.msra.mxu0 %v68
    %227 = vmatpush.msra.mxu0 %v67
    %228 = vmatpush.msra.mxu0 %v66
    %229 = vmatpush.msra.mxu0 %v65
    %230 = vmatpush.msra.mxu0 %v64
    %231 = vmatpush.msra.mxu0 %v63
    %232 = vmatpush.msra.mxu0 %v62
    %233 = vmatpush.msra.mxu0 %v61
    %234 = vmatpush.msra.mxu0 %v60
    %235 = vmatpush.msra.mxu0 %v59
    %236 = vmatpush.msra.mxu0 %v58
    %237 = vmatpush.msra.mxu0 %v57
    %238 = vmatpush.msra.mxu0 %v56
    %239 = vmatpush.msra.mxu0 %v55
    %240 = vmatpush.msra.mxu0 %v54
    %241 = vmatmul.f32.gmra.mxu0 %v19
    %v242 = vpop.f32.mrf.mxu0
    %v243 = vadd.f32 %v220, %v242
    %244 = vmatmul.f32.gmra.mxu0 %v29
    %v245 = vpop.f32.mrf.mxu0
    %v246 = vadd.f32 %v223, %v245
    %247 = vdwg.mxu0
    %248 = vmatpush.msra.mxu0 %v85
    %249 = vmatpush.msra.mxu0 %v84
    %250 = vmatpush.msra.mxu0 %v83
    %251 = vmatpush.msra.mxu0 %v82
    %252 = vmatpush.msra.mxu0 %v81
    %253 = vmatpush.msra.mxu0 %v80
    %254 = vmatpush.msra.mxu0 %v79
    %255 = vmatpush.msra.mxu0 %v78
    %256 = vmatpush.msra.mxu0 %v77
    %257 = vmatpush.msra.mxu0 %v76
    %258 = vmatpush.msra.mxu0 %v75
    %259 = vmatpush.msra.mxu0 %v74
    %260 = vmatpush.msra.mxu0 %v73
    %261 = vmatpush.msra.mxu0 %v72
    %262 = vmatpush.msra.mxu0 %v71
    %263 = vmatpush.msra.mxu0 %v70
    %264 = vmatmul.f32.gmra.mxu0 %v20
    %v265 = vpop.f32.mrf.mxu0
    %v266 = vadd.f32 %v243, %v265
    %267 = vmatmul.f32.gmra.mxu0 %v30
    %v268 = vpop.f32.mrf.mxu0
    %v269 = vadd.f32 %v246, %v268
    %270 = vdwg.mxu0
    %271 = vmatpush.msra.mxu0 %v101
    %272 = vmatpush.msra.mxu0 %v100
    %273 = vmatpush.msra.mxu0 %v99
    %274 = vmatpush.msra.mxu0 %v98
    %275 = vmatpush.msra.mxu0 %v97
    %276 = vmatpush.msra.mxu0 %v96
    %277 = vmatpush.msra.mxu0 %v95
    %278 = vmatpush.msra.mxu0 %v94
    %279 = vmatpush.msra.mxu0 %v93
    %280 = vmatpush.msra.mxu0 %v92
    %281 = vmatpush.msra.mxu0 %v91
    %282 = vmatpush.msra.mxu0 %v90
    %283 = vmatpush.msra.mxu0 %v89
    %284 = vmatpush.msra.mxu0 %v88
    %285 = vmatpush.msra.mxu0 %v87
    %286 = vmatpush.msra.mxu0 %v86
    %287 = vmatmul.f32.gmra.mxu0 %v21
    %v288 = vpop.f32.mrf.mxu0
    %v289 = vadd.f32 %v266, %v288
    %290 = vmatmul.f32.gmra.mxu0 %v31
    %v291 = vpop.f32.mrf.mxu0
    %v292 = vadd.f32 %v269, %v291
    %293 = vdwg.mxu0
    %294 = vmatpush.msra.mxu0 %v117
    %295 = vmatpush.msra.mxu0 %v116
    %296 = vmatpush.msra.mxu0 %v115
    %297 = vmatpush.msra.mxu0 %v114
    %298 = vmatpush.msra.mxu0 %v113
    %299 = vmatpush.msra.mxu0 %v112
    %300 = vmatpush.msra.mxu0 %v111
    %301 = vmatpush.msra.mxu0 %v110
    %302 = vmatpush.msra.mxu0 %v109
    %303 = vmatpush.msra.mxu0 %v108
    %304 = vmatpush.msra.mxu0 %v107
    %305 = vmatpush.msra.mxu0 %v106
    %306 = vmatpush.msra.mxu0 %v105
    %307 = vmatpush.msra.mxu0 %v104
    %308 = vmatpush.msra.mxu0 %v103
    %309 = vmatpush.msra.mxu0 %v102
    %310 = vmatmul.f32.gmra.mxu0 %v22
    %v311 = vpop.f32.mrf.mxu0
    %v312 = vadd.f32 %v289, %v311
    %313 = vmatmul.f32.gmra.mxu0 %v32
    %v314 = vpop.f32.mrf.mxu0
    %v315 = vadd.f32 %v292, %v314
    %316 = vdwg.mxu0
    %317 = vmatpush.msra.mxu0 %v133
    %318 = vmatpush.msra.mxu0 %v132
    %319 = vmatpush.msra.mxu0 %v131
    %320 = vmatpush.msra.mxu0 %v130
    %321 = vmatpush.msra.mxu0 %v129
    %322 = vmatpush.msra.mxu0 %v128
    %323 = vmatpush.msra.mxu0 %v127
    %324 = vmatpush.msra.mxu0 %v126
    %325 = vmatpush.msra.mxu0 %v125
    %326 = vmatpush.msra.mxu0 %v124
    %327 = vmatpush.msra.mxu0 %v123
    %328 = vmatpush.msra.mxu0 %v122
    %329 = vmatpush.msra.mxu0 %v121
    %330 = vmatpush.msra.mxu0 %v120
    %331 = vmatpush.msra.mxu0 %v119
    %332 = vmatpush.msra.mxu0 %v118
    %333 = vmatmul.f32.gmra.mxu0 %v23
    %v334 = vpop.f32.mrf.mxu0
    %v335 = vadd.f32 %v312, %v334
    %336 = vmatmul.f32.gmra.mxu0 %v33
    %v337 = vpop.f32.mrf.mxu0
    %v338 = vadd.f32 %v315, %v337
    %339 = vdwg.mxu0
    %340 = vmatpush.msra.mxu0 %v149
    %341 = vmatpush.msra.mxu0 %v148
    %342 = vmatpush.msra.mxu0 %v147
    %343 = vmatpush.msra.mxu0 %v146
    %344 = vmatpush.msra.mxu0 %v145
    %345 = vmatpush.msra.mxu0 %v144
    %346 = vmatpush.msra.mxu0 %v143
    %347 = vmatpush.msra.mxu0 %v142
    %348 = vmatpush.msra.mxu0 %v141
    %349 = vmatpush.msra.mxu0 %v140
    %350 = vmatpush.msra.mxu0 %v139
    %351 = vmatpush.msra.mxu0 %v138
    %352 = vmatpush.msra.mxu0 %v137
    %353 = vmatpush.msra.mxu0 %v136
    %354 = vmatpush.msra.mxu0 %v135
    %355 = vmatpush.msra.mxu0 %v134
    %356 = vmatmul.f32.gmra.mxu0 %v24
    %v357 = vpop.f32.mrf.mxu0
    %v358 = vadd.f32 %v335, %v357
    %359 = vmatmul.f32.gmra.mxu0 %v34
    %v360 = vpop.f32.mrf.mxu0
    %v361 = vadd.f32 %v338, %v360
    %362 = vdwg.mxu0
    %363 = vmatpush.msra.mxu0 %v165
    %364 = vmatpush.msra.mxu0 %v164
    %365 = vmatpush.msra.mxu0 %v163
    %366 = vmatpush.msra.mxu0 %v162
    %367 = vmatpush.msra.mxu0 %v161
    %368 = vmatpush.msra.mxu0 %v160
    %369 = vmatpush.msra.mxu0 %v159
    %370 = vmatpush.msra.mxu0 %v158
    %371 = vmatpush.msra.mxu0 %v157
    %372 = vmatpush.msra.mxu0 %v156
    %373 = vmatpush.msra.mxu0 %v155
    %374 = vmatpush.msra.mxu0 %v154
    %375 = vmatpush.msra.mxu0 %v153
    %376 = vmatpush.msra.mxu0 %v152
    %377 = vmatpush.msra.mxu0 %v151
    %378 = vmatpush.msra.mxu0 %v150
    %379 = vmatmul.f32.gmra.mxu0 %v25
    %v380 = vpop.f32.mrf.mxu0
    %v381 = vadd.f32 %v358, %v380
    %382 = vmatmul.f32.gmra.mxu0 %v35
    %v383 = vpop.f32.mrf.mxu0
    %v384 = vadd.f32 %v361, %v383
    %385 = vdwg.mxu0
    %386 = vmatpush.msra.mxu0 %v181
    %387 = vmatpush.msra.mxu0 %v180
    %388 = vmatpush.msra.mxu0 %v179
    %389 = vmatpush.msra.mxu0 %v178
    %390 = vmatpush.msra.mxu0 %v177
    %391 = vmatpush.msra.mxu0 %v176
    %392 = vmatpush.msra.mxu0 %v175
    %393 = vmatpush.msra.mxu0 %v174
    %394 = vmatpush.msra.mxu0 %v173
    %395 = vmatpush.msra.mxu0 %v172
    %396 = vmatpush.msra.mxu0 %v171
    %397 = vmatpush.msra.mxu0 %v170
    %398 = vmatpush.msra.mxu0 %v169
    %399 = vmatpush.msra.mxu0 %v168
    %400 = vmatpush.msra.mxu0 %v167
    %401 = vmatpush.msra.mxu0 %v166
    %402 = vmatmul.f32.gmra.mxu0 %v26
    %v403 = vpop.f32.mrf.mxu0
    %v404 = vadd.f32 %v381, %v403
    %405 = vmatmul.f32.gmra.mxu0 %v36
    %v406 = vpop.f32.mrf.mxu0
    %v407 = vadd.f32 %v384, %v406
    %408 = vdwg.mxu0
    %409 = vmatpush.msra.mxu0 %v197
    %410 = vmatpush.msra.mxu0 %v196
    %411 = vmatpush.msra.mxu0 %v195
    %412 = vmatpush.msra.mxu0 %v194
    %413 = vmatpush.msra.mxu0 %v193
    %414 = vmatpush.msra.mxu0 %v192
    %415 = vmatpush.msra.mxu0 %v191
    %416 = vmatpush.msra.mxu0 %v190
    %417 = vmatpush.msra.mxu0 %v189
    %418 = vmatpush.msra.mxu0 %v188
    %419 = vmatpush.msra.mxu0 %v187
    %420 = vmatpush.msra.mxu0 %v186
    %421 = vmatpush.msra.mxu0 %v185
    %422 = vmatpush.msra.mxu0 %v184
    %423 = vmatpush.msra.mxu0 %v183
    %424 = vmatpush.msra.mxu0 %v182
    %425 = vmatmul.f32.gmra.mxu0 %v27
    %v426 = vpop.f32.mrf.mxu0
    %v427 = vadd.f32 %v404, %v426
    %428 = vmatmul.f32.gmra.mxu0 %v37
    %v429 = vpop.f32.mrf.mxu0
    %v430 = vadd.f32 %v407, %v429
    %431 = vdwg.mxu0
    %v432 = vld [vmem:[%s3] sm:$0xff]
    %v433 = vld [vmem:[%s3 + $0x8] sm:$0xff]
    %v434 = vld [vmem:[%s3 + $0x10] sm:$0xff]
    %v435 = vld [vmem:[%s3 + $0x18] sm:$0xff]
    %v436 = vld [vmem:[%s3 + $0x20] sm:$0xff]
    %v437 = vld [vmem:[%s3 + $0x28] sm:$0xff]
    %v438 = vld [vmem:[%s3 + $0x30] sm:$0xff]
    %v439 = vld [vmem:[%s3 + $0x38] sm:$0xff]
    %v440 = vld [vmem:[%s3 + $0x40] sm:$0xff]
    %v441 = vld [vmem:[%s3 + $0x48] sm:$0xff]
    %v442 = vld [vmem:[%s3 + $0x50] sm:$0xff]
    %v443 = vld [vmem:[%s3 + $0x58] sm:$0xff]
    %v444 = vld [vmem:[%s3 + $0x60] sm:$0xff]
    %v445 = vld [vmem:[%s3 + $0x68] sm:$0xff]
    %v446 = vld [vmem:[%s3 + $0x70] sm:$0xff]
    %v447 = vld [vmem:[%s3 + $0x78] sm:$0xff]
    %v448 = vld [vmem:[%s3 + $0x80] sm:$0xff]
    %v449 = vld [vmem:[%s3 + $0x88] sm:$0xff]
    %v450 = vld [vmem:[%s3 + $0x90] sm:$0xff]
    %v451 = vld [vmem:[%s3 + $0x98] sm:$0xff]
    %v452 = vld [vmem:[%s3 + $0xa0] sm:$0xff]
    %v453 = vld [vmem:[%s3 + $0xa8] sm:$0xff]
    %v454 = vld [vmem:[%s3 + $0xb0] sm:$0xff]
    %v455 = vld [vmem:[%s3 + $0xb8] sm:$0xff]
    %v456 = vld [vmem:[%s3 + $0xc0] sm:$0xff]
    %v457 = vld [vmem:[%s3 + $0xc8] sm:$0xff]
    %v458 = vld [vmem:[%s3 + $0xd0] sm:$0xff]
    %v459 = vld [vmem:[%s3 + $0xd8] sm:$0xff]
    %v460 = vld [vmem:[%s3 + $0xe0] sm:$0xff]
    %v461 = vld [vmem:[%s3 + $0xe8] sm:$0xff]
    %v462 = vld [vmem:[%s3 + $0xf0] sm:$0xff]
    %v463 = vld [vmem:[%s3 + $0xf8] sm:$0xff]
    %v464 = vld [vmem:[%s3 + $0x100] sm:$0xff]
    %v465 = vld [vmem:[%s3 + $0x108] sm:$0xff]
    %v466 = vld [vmem:[%s3 + $0x110] sm:$0xff]
    %v467 = vld [vmem:[%s3 + $0x118] sm:$0xff]
    %v468 = vld [vmem:[%s3 + $0x120] sm:$0xff]
    %v469 = vld [vmem:[%s3 + $0x128] sm:$0xff]
    %v470 = vld [vmem:[%s3 + $0x130] sm:$0xff]
    %v471 = vld [vmem:[%s3 + $0x138] sm:$0xff]
    %v472 = vld [vmem:[%s3 + $0x140] sm:$0xff]
    %v473 = vld [vmem:[%s3 + $0x148] sm:$0xff]
    %v474 = vld [vmem:[%s3 + $0x150] sm:$0xff]
    %v475 = vld [vmem:[%s3 + $0x158] sm:$0xff]
    %v476 = vld [vmem:[%s3 + $0x160] sm:$0xff]
    %v477 = vld [vmem:[%s3 + $0x168] sm:$0xff]
    %v478 = vld [vmem:[%s3 + $0x170] sm:$0xff]
    %v479 = vld [vmem:[%s3 + $0x178] sm:$0xff]
    %vm480 = vcmask 785408
    %v482 = vsel %vm480, %v427, 0
    %v485 = vsel %vm480, %v430, 0
    %487 = vmatpush.msra.mxu0 0.0
    %488 = vmatpush.msra.mxu0 0.0
    %489 = vmatpush.msra.mxu0 0.0
    %490 = vmatpush.msra.mxu0 0.0
    %491 = vmatpush.msra.mxu0 %v476
    %492 = vmatpush.msra.mxu0 %v472
    %493 = vmatpush.msra.mxu0 %v468
    %494 = vmatpush.msra.mxu0 %v464
    %495 = vmatpush.msra.mxu0 %v460
    %496 = vmatpush.msra.mxu0 %v456
    %497 = vmatpush.msra.mxu0 %v452
    %498 = vmatpush.msra.mxu0 %v448
    %499 = vmatpush.msra.mxu0 %v444
    %500 = vmatpush.msra.mxu0 %v440
    %501 = vmatpush.msra.mxu0 %v436
    %502 = vmatpush.msra.mxu0 %v432
    %503 = vmatmul.f32.gmra.mxu0 %v482
    %v504 = vpop.f32.mrf.mxu0
    %v505 = vadd.f32 0.0, %v504
    %506 = vmatmul.f32.gmra.mxu0 %v485
    %v507 = vpop.f32.mrf.mxu0
    %v508 = vadd.f32 0.0, %v507
    %509 = vdwg.mxu0
    %510 = vmatpush.msra.mxu0 0.0
    %511 = vmatpush.msra.mxu0 0.0
    %512 = vmatpush.msra.mxu0 0.0
    %513 = vmatpush.msra.mxu0 0.0
    %514 = vmatpush.msra.mxu0 %v477
    %515 = vmatpush.msra.mxu0 %v473
    %516 = vmatpush.msra.mxu0 %v469
    %517 = vmatpush.msra.mxu0 %v465
    %518 = vmatpush.msra.mxu0 %v461
    %519 = vmatpush.msra.mxu0 %v457
    %520 = vmatpush.msra.mxu0 %v453
    %521 = vmatpush.msra.mxu0 %v449
    %522 = vmatpush.msra.mxu0 %v445
    %523 = vmatpush.msra.mxu0 %v441
    %524 = vmatpush.msra.mxu0 %v437
    %525 = vmatpush.msra.mxu0 %v433
    %526 = vmatmul.f32.gmra.mxu0 %v482
    %v527 = vpop.f32.mrf.mxu0
    %v528 = vadd.f32 0.0, %v527
    %529 = vmatmul.f32.gmra.mxu0 %v485
    %v530 = vpop.f32.mrf.mxu0
    %v531 = vadd.f32 0.0, %v530
    %532 = vdwg.mxu0
    %533 = vmatpush.msra.mxu0 0.0
    %534 = vmatpush.msra.mxu0 0.0
    %535 = vmatpush.msra.mxu0 0.0
    %536 = vmatpush.msra.mxu0 0.0
    %537 = vmatpush.msra.mxu0 %v478
    %538 = vmatpush.msra.mxu0 %v474
    %539 = vmatpush.msra.mxu0 %v470
    %540 = vmatpush.msra.mxu0 %v466
    %541 = vmatpush.msra.mxu0 %v462
    %542 = vmatpush.msra.mxu0 %v458
    %543 = vmatpush.msra.mxu0 %v454
    %544 = vmatpush.msra.mxu0 %v450
    %545 = vmatpush.msra.mxu0 %v446
    %546 = vmatpush.msra.mxu0 %v442
    %547 = vmatpush.msra.mxu0 %v438
    %548 = vmatpush.msra.mxu0 %v434
    %549 = vmatmul.f32.gmra.mxu0 %v482
    %v550 = vpop.f32.mrf.mxu0
    %v551 = vadd.f32 0.0, %v550
    %552 = vmatmul.f32.gmra.mxu0 %v485
    %v553 = vpop.f32.mrf.mxu0
    %v554 = vadd.f32 0.0, %v553
    %555 = vdwg.mxu0
    %556 = vmatpush.msra.mxu0 0.0
    %557 = vmatpush.msra.mxu0 0.0
    %558 = vmatpush.msra.mxu0 0.0
    %559 = vmatpush.msra.mxu0 0.0
    %560 = vmatpush.msra.mxu0 %v479
    %561 = vmatpush.msra.mxu0 %v475
    %562 = vmatpush.msra.mxu0 %v471
    %563 = vmatpush.msra.mxu0 %v467
    %564 = vmatpush.msra.mxu0 %v463
    %565 = vmatpush.msra.mxu0 %v459
    %566 = vmatpush.msra.mxu0 %v455
    %567 = vmatpush.msra.mxu0 %v451
    %568 = vmatpush.msra.mxu0 %v447
    %569 = vmatpush.msra.mxu0 %v443
    %570 = vmatpush.msra.mxu0 %v439
    %571 = vmatpush.msra.mxu0 %v435
    %572 = vmatmul.f32.gmra.mxu0 %v482
    %v573 = vpop.f32.mrf.mxu0
    %v574 = vadd.f32 0.0, %v573
    %575 = vmatmul.f32.gmra.mxu0 %v485
    %v576 = vpop.f32.mrf.mxu0
    %v577 = vadd.f32 0.0, %v576
    %578 = vdwg.mxu0
    %v583 = vrot.slane %v528, 7
    %v584 = vrot.slane %v551, 6
    %v585 = vrot.slane %v574, 5
    %vm586 = vcmask 1040384
    %v587 = vsel %vm586, %v505, %v583
    %vm588 = vcmask 1042434
    %v589 = vsel %vm588, %v584, %v585
    %vm590 = vcmask 1041408
    %v591 = vsel %vm590, %v587, %v589
    %vm592 = vcmask 1041409
    %v593 = vsel %vm592, %v505, %v583
    %vm594 = vcmask 1043459
    %v595 = vsel %vm594, %v584, %v585
    %vm596 = vcmask 1042433
    %v597 = vsel %vm596, %v593, %v595
    %v598 = vrot.slane %v597, 1
    %v599 = vsel %vm588, %v505, %v583
    %vm600 = vcmask 1044484
    %v601 = vsel %vm600, %v584, %v585
    %vm602 = vcmask 1043458
    %v603 = vsel %vm602, %v599, %v601
    %v604 = vrot.slane %v603, 2
    %v605 = vsel %vm594, %v505, %v583
    %vm606 = vcmask 1045509
    %v607 = vsel %vm606, %v584, %v585
    %vm608 = vcmask 1044483
    %v609 = vsel %vm608, %v605, %v607
    %v610 = vrot.slane %v609, 3
    %v611 = vsel %vm600, %v505, %v583
    %vm612 = vcmask 1046534
    %v613 = vsel %vm612, %v584, %v585
    %vm614 = vcmask 1045508
    %v615 = vsel %vm614, %v611, %v613
    %v616 = vrot.slane %v615, 4
    %v617 = vsel %vm606, %v505, %v583
    %vm618 = vcmask 1046528
    %v619 = vsel %vm618, %v585, %v584
    %vm620 = vcmask 1046533
    %v621 = vsel %vm620, %v617, %v619
    %v622 = vrot.slane %v621, 5
    %v623 = vsel %vm612, %v505, %v583
    %v624 = vsel %vm586, %v584, %v585
    %vm625 = vcmask 1045504
    %v626 = vsel %vm625, %v624, %v623
    %v627 = vrot.slane %v626, 6
    %v628 = vsel %vm618, %v583, %v505
    %v629 = vsel %vm592, %v584, %v585
    %vm630 = vcmask 1046529
    %v631 = vsel %vm630, %v629, %v628
    %v632 = vrot.slane %v631, 7
    %v641 = vlaneseq
    %vm642 = vcmp.ge.s32.totalorder %v641, 0
    %vm643 = vcmp.lt.s32.totalorder %v641, 512
    %vm644 = vmand %vm642, %vm643
    %645 = vst.msk [vmem:[#allocation2] ss:$2 sm:$0xf] %vm644, %v591
    %s646 = scalar_lea.vmem [#allocation2], 8
    %647 = vst.msk [vmem:[%s646] ss:$2 sm:$0xf] %vm644, %v598
    %s648 = scalar_lea.vmem [#allocation2], 16
    %649 = vst.msk [vmem:[%s648] ss:$2 sm:$0xf] %vm644, %v604
    %s650 = scalar_lea.vmem [#allocation2], 24
    %651 = vst.msk [vmem:[%s650] ss:$2 sm:$0xf] %vm644, %v610
    %s652 = scalar_lea.vmem [#allocation2], 32
    %653 = vst.msk [vmem:[%s652] ss:$2 sm:$0xf] %vm644, %v616
    %s654 = scalar_lea.vmem [#allocation2], 40
    %655 = vst.msk [vmem:[%s654] ss:$2 sm:$0xf] %vm644, %v622
    %s656 = scalar_lea.vmem [#allocation2], 48
    %657 = vst.msk [vmem:[%s656] ss:$2 sm:$0xf] %vm644, %v627
    %s658 = scalar_lea.vmem [#allocation2], 56
    %659 = vst.msk [vmem:[%s658] ss:$2 sm:$0xf] %vm644, %v632
    %v664 = vrot.slane %v531, 7
    %v665 = vrot.slane %v554, 6
    %v666 = vrot.slane %v577, 5
    %v667 = vsel %vm586, %v508, %v664
    %v668 = vsel %vm588, %v665, %v666
    %v669 = vsel %vm590, %v667, %v668
    %v670 = vsel %vm592, %v508, %v664
    %v671 = vsel %vm594, %v665, %v666
    %v672 = vsel %vm596, %v670, %v671
    %v673 = vrot.slane %v672, 1
    %v674 = vsel %vm588, %v508, %v664
    %v675 = vsel %vm600, %v665, %v666
    %v676 = vsel %vm602, %v674, %v675
    %v677 = vrot.slane %v676, 2
    %v678 = vsel %vm594, %v508, %v664
    %v679 = vsel %vm606, %v665, %v666
    %v680 = vsel %vm608, %v678, %v679
    %v681 = vrot.slane %v680, 3
    %v682 = vsel %vm600, %v508, %v664
    %v683 = vsel %vm612, %v665, %v666
    %v684 = vsel %vm614, %v682, %v683
    %v685 = vrot.slane %v684, 4
    %v686 = vsel %vm606, %v508, %v664
    %v687 = vsel %vm618, %v666, %v665
    %v688 = vsel %vm620, %v686, %v687
    %v689 = vrot.slane %v688, 5
    %v690 = vsel %vm612, %v508, %v664
    %v691 = vsel %vm586, %v665, %v666
    %v692 = vsel %vm625, %v691, %v690
    %v693 = vrot.slane %v692, 6
    %v694 = vsel %vm618, %v664, %v508
    %v695 = vsel %vm592, %v665, %v666
    %v696 = vsel %vm630, %v695, %v694
    %v697 = vrot.slane %v696, 7
    %s706 = scalar_lea.vmem [#allocation2], 1
    %707 = vst.msk [vmem:[%s706] ss:$2 sm:$0xf] %vm644, %v669
    %s708 = scalar_lea.vmem [#allocation2], 9
    %709 = vst.msk [vmem:[%s708] ss:$2 sm:$0xf] %vm644, %v673
    %s710 = scalar_lea.vmem [#allocation2], 17
    %711 = vst.msk [vmem:[%s710] ss:$2 sm:$0xf] %vm644, %v677
    %s712 = scalar_lea.vmem [#allocation2], 25
    %713 = vst.msk [vmem:[%s712] ss:$2 sm:$0xf] %vm644, %v681
    %s714 = scalar_lea.vmem [#allocation2], 33
    %715 = vst.msk [vmem:[%s714] ss:$2 sm:$0xf] %vm644, %v685
    %s716 = scalar_lea.vmem [#allocation2], 41
    %717 = vst.msk [vmem:[%s716] ss:$2 sm:$0xf] %vm644, %v689
    %s718 = scalar_lea.vmem [#allocation2], 49
    %719 = vst.msk [vmem:[%s718] ss:$2 sm:$0xf] %vm644, %v693
    %s720 = scalar_lea.vmem [#allocation2], 57
    %721 = vst.msk [vmem:[%s720] ss:$2 sm:$0xf] %vm644, %v697
    // Predicated region
    $region18: #{tpu_custom_call.1} parent=1 // pred_check
      _
    $region19: #{tpu_custom_call.1} parent=1 // pred_check_branch
      %723 = sbr.rel (0) target = $region21
    $region20: #{tpu_custom_call.1} parent=1 // pred_region
      %725 = vsyncadd [#allocation3], 0
      %s726 = sshll.u32 [#allocation2], 4
      %s727 = int_to_ptr.vmem [resolvable:$true] %s726
      %s728 = sshll.u32 %s4, 4
      %s729 = int_to_ptr.hbm [resolvable:$true] %s728
      %734 = dma.vmem_to_hbm [thread:$0]  %s727, 1024, %s729, [#allocation3], 128, 128, 8
    $region21: #{tpu_custom_call.1} parent=1 // pred_fallthru
      _
    // Predicated region
    $region22: #{tpu_custom_call.1} parent=1 // pred_check
      _
    $region23: #{tpu_custom_call.1} parent=1 // pred_check_branch
      %736 = sbr.rel (0) target = $region25
    $region24: #{tpu_custom_call.1} parent=1 // pred_region
      %738 = dma.done [#allocation3], 1024
    $region25: #{tpu_custom_call.1} parent=1 // pred_fallthru
      _
    %739 = vsyncpa [#allocation3], 1

</llo_original>
